<compile_context>
chip_gen: v7x
topology: tpu7x:2x2x1
jax: 0.10.0
libtpu: 0.0.40
codegen_flags: <defaults>
</compile_context>

<pallas_src>
import jax
import jax.numpy as jnp
from jax.experimental import pallas as pl
from jax.experimental.pallas import tpu as pltpu


LANE_WIDTH = 512          # C: lanes per row (multiple of 128)
MAX_BLOCK_ROWS = 1024     # max sublane rows per grid step (multiple of 8)
TARGET_GRID_STEPS = 8     # aim for >= 4-8 steps so v7x megacore can shard


def _round_up(a, b):
    return (a + b - 1) // b * b


def lr_kernel(wb_ref, x_ref, o_ref):
    # wb_ref: SMEM (3,)  = [w0, w1, b]
    # x_ref : VMEM (2, TILE_R, C)  feature planes, sublane+lane dense
    # o_ref : VMEM (TILE_R, C)
    w0 = wb_ref[0]
    w1 = wb_ref[1]
    b = wb_ref[2]
    # Pure VPU multiply-add on full dense tiles (no MXU for K=2).
    z = x_ref[0] * w0 + x_ref[1] * w1 + b
    # sigmoid(z) = 0.5 * tanh(z/2) + 0.5  -> single EUP op, no divide.
    o_ref[...] = (0.5 * jnp.tanh(0.5 * z) + 0.5).astype(o_ref.dtype)


def lr_forward_planes(x_planes, weight, bias, *,
                      max_block_rows=MAX_BLOCK_ROWS,
                      target_grid_steps=TARGET_GRID_STEPS,
                      out_dtype=jnp.float32):
    """Zero-wrapper-copy entry point.

    x_planes: (2, R, C) float32 feature-major planes of the flattened batch
      (plane 0 = x[:, 0], plane 1 = x[:, 1] in flat batch order),
      with R % 8 == 0 and C % 128 == 0 (producer supplies this layout).
    Returns (R, C) = sigmoid(x0*w0 + x1*w1 + b), same flat batch order.
    """
    two, r_rows, c_lanes = x_planes.shape
    assert two == 2 and r_rows % 8 == 0 and c_lanes % 128 == 0

    # Block rows: big enough to amortize per-step overhead, small enough to
    # (a) stay inside the VMEM budget and (b) give >= target_grid_steps steps.
    block_r = max(8, min(min(max_block_rows, r_rows),
                         _round_up(pl.cdiv(r_rows, target_grid_steps), 8)))
    grid = (pl.cdiv(r_rows, block_r),)   # partial last block is masked by Pallas

    wb = jnp.concatenate([weight.reshape(-1).astype(jnp.float32),
                          bias.reshape(-1).astype(jnp.float32)])   # (3,)

    return pl.pallas_call(
        lr_kernel,
        out_shape=jax.ShapeDtypeStruct((r_rows, c_lanes), out_dtype),
        grid=grid,
        in_specs=[
            pl.BlockSpec(memory_space=pltpu.MemorySpace.SMEM),       # [w0,w1,b]
            pl.BlockSpec((2, block_r, c_lanes), lambda i: (0, i, 0)),  # planes
        ],
        out_specs=pl.BlockSpec((block_r, c_lanes), lambda i: (i, 0)),
        compiler_params=pltpu.CompilerParams(
            dimension_semantics=("parallel",),
            vmem_limit_bytes=32 * 1024 * 1024,
        ),
    )(wb, x_planes)


def lr_forward(x, weight, bias, *, lane_width=LANE_WIDTH, **kw):
    """Drop-in (N, 2) -> (N, 1) wrapper matching torch LR.forward.

    NOTE: the pad+transpose relayout below is one extra HBM pass; for a truly
    memory-bound deployment, have the producer emit the (2, R, C) feature-major
    layout and call `lr_forward_planes` directly (zero wrapper copies).
    """
    n, in_f = x.shape
    assert in_f == 2, "LR module is Linear(2, 1)"

    # Pad flat batch to a multiple of 8*C so the planes are (R, C) with R % 8 == 0.
    n_pad = _round_up(max(n, 1), 8 * lane_width)
    xp = x.astype(jnp.float32)
    if n_pad != n:
        xp = jnp.pad(xp, ((0, n_pad - n), (0, 0)))
    x_planes = xp.T.reshape(2, n_pad // lane_width, lane_width)   # (2, R, C)

    out = lr_forward_planes(x_planes, weight, bias, **kw)          # (R, C)

    # Free reshape; the [:n] slice only materializes when padding was needed.
    return out.reshape(n_pad)[:n].reshape(n, 1)


if __name__ == "__main__":
    key = jax.random.PRNGKey(0)
    k_x1, k_x2, k_x3, k_w, k_b = jax.random.split(key, 5)

    IN_F, OUT_F = 2, 1
    # Deterministic init mimicking torch.nn.Linear default:
    # uniform(-1/sqrt(in_features), 1/sqrt(in_features))
    bound = 1.0 / jnp.sqrt(jnp.float32(IN_F))
    weight = jax.random.uniform(k_w, (OUT_F, IN_F), jnp.float32, -bound, bound)
    bias = jax.random.uniform(k_b, (OUT_F,), jnp.float32, -bound, bound)

    def reference(x):
        return jax.nn.sigmoid(x @ weight.T + bias[None, :])

    # 1) Tiny batch: single grid step + padded tail.
    x1 = jax.random.normal(k_x1, (8, IN_F), jnp.float32)
    y1 = jax.block_until_ready(lr_forward(x1, weight, bias))
    assert y1.shape == (8, OUT_F)
    assert jnp.allclose(y1, reference(x1), atol=1e-5, rtol=1e-5)

    # 2) Exact multiple of the 8*C granule: no pad, no output-slice copy.
    x2 = jax.random.normal(k_x2, (4096, IN_F), jnp.float32)
    y2 = jax.block_until_ready(lr_forward(x2, weight, bias))
    assert jnp.allclose(y2, reference(x2), atol=1e-5, rtol=1e-5)

    # 3) Ragged batch: multi-step grid with a masked partial edge block.
    x3 = jax.random.normal(k_x3, (35000, IN_F), jnp.float32)
    y3 = jax.block_until_ready(lr_forward(x3, weight, bias))
    assert y3.shape == (35000, OUT_F)
    assert jnp.allclose(y3, reference(x3), atol=1e-5, rtol=1e-5)

    print("KERNEL_OK")
</pallas_src>

<mosaic_0001>
module attributes {stable_mosaic.version = 11 : i64} {
  func.func @lr_kernel(%arg0: i32, %arg1: memref<3xf32, #tpu.memory_space<smem>>, %arg2: memref<2x8x512xf32, #tpu.memory_space<vmem>>, %arg3: memref<8x512xf32, #tpu.memory_space<vmem>>) attributes {dimension_semantics = [#tpu.dimension_semantics<parallel>], iteration_bounds = array<i64: 1>, scalar_prefetch = 0 : i64, scratch_operands = 0 : i64, tpu.core_type = #tpu.core_type<tc>, window_params = [{transform_indices = @transform_0, window_bounds = array<i64: 3>}, {transform_indices = @transform_1, window_bounds = array<i64: 2, 8, 512>}, {transform_indices = @transform_2, window_bounds = array<i64: 8, 512>}]} {
    %c0 = arith.constant 0 : index
    %0 = memref.load %arg1[%c0] : memref<3xf32, #tpu.memory_space<smem>>
    %c1 = arith.constant 1 : index
    %1 = memref.load %arg1[%c1] : memref<3xf32, #tpu.memory_space<smem>>
    %c2 = arith.constant 2 : index
    %2 = memref.load %arg1[%c2] : memref<3xf32, #tpu.memory_space<smem>>
    %c0_0 = arith.constant 0 : index
    %c0_1 = arith.constant 0 : index
    %c0_2 = arith.constant 0 : index
    %3 = vector.load %arg2[%c0_0, %c0_1, %c0_2] : memref<2x8x512xf32, #tpu.memory_space<vmem>>, vector<1x8x512xf32>
    %4 = vector.shape_cast %3 : vector<1x8x512xf32> to vector<8x512xf32>
    %5 = vector.broadcast %0 : f32 to vector<8x512xf32>
    %6 = arith.mulf %4, %5 : vector<8x512xf32>
    %c1_3 = arith.constant 1 : index
    %c0_4 = arith.constant 0 : index
    %c0_5 = arith.constant 0 : index
    %7 = vector.load %arg2[%c1_3, %c0_4, %c0_5] : memref<2x8x512xf32, #tpu.memory_space<vmem>>, vector<1x8x512xf32>
    %8 = vector.shape_cast %7 : vector<1x8x512xf32> to vector<8x512xf32>
    %9 = vector.broadcast %1 : f32 to vector<8x512xf32>
    %10 = arith.mulf %8, %9 : vector<8x512xf32>
    %11 = arith.addf %6, %10 : vector<8x512xf32>
    %12 = vector.broadcast %2 : f32 to vector<8x512xf32>
    %13 = arith.addf %11, %12 : vector<8x512xf32>
    %cst = arith.constant 5.000000e-01 : f32
    %14 = vector.broadcast %cst : f32 to vector<8x512xf32>
    %15 = arith.mulf %14, %13 : vector<8x512xf32>
    %16 = math.tanh %15 : vector<8x512xf32>
    %cst_6 = arith.constant 5.000000e-01 : f32
    %17 = vector.broadcast %cst_6 : f32 to vector<8x512xf32>
    %18 = arith.mulf %17, %16 : vector<8x512xf32>
    %cst_7 = arith.constant 5.000000e-01 : f32
    %19 = vector.broadcast %cst_7 : f32 to vector<8x512xf32>
    %20 = arith.addf %18, %19 : vector<8x512xf32>
    %c0_8 = arith.constant 0 : index
    %c0_9 = arith.constant 0 : index
    %21 = vector.load %arg3[%c0_8, %c0_9] : memref<8x512xf32, #tpu.memory_space<vmem>>, vector<8x512xf32>
    tpu.vector_store %arg3[%c0_8, %c0_9], %20 {strides = array<i32>} : memref<8x512xf32, #tpu.memory_space<vmem>>, vector<8x512xf32>,
    return
  }
  func.func @transform_0(%arg0: i32) -> i32 {
    %c0_i32 = arith.constant 0 : i32
    %c0_i32_0 = arith.constant 0 : i32
    return %c0_i32 : i32
  }
  func.func @transform_1(%arg0: i32) -> (i32, i32, i32) {
    %c0_i32 = arith.constant 0 : i32
    %c0_i32_0 = arith.constant 0 : i32
    %c0_i32_1 = arith.constant 0 : i32
    return %c0_i32, %arg0, %c0_i32_0 : i32, i32, i32
  }
  func.func @transform_2(%arg0: i32) -> (i32, i32) {
    %c0_i32 = arith.constant 0 : i32
    %c0_i32_0 = arith.constant 0 : i32
    return %arg0, %c0_i32 : i32, i32
  }
}

</mosaic_0001>

<llo_original>
// kernel: tpu_custom_call.1
$region0: #{tpu_custom_call.1}
  #allocation0 [shape = 'u32[]', space=smem, size = 0x4, offset = 0x4, fixed_abs, tag = 'smem constant byte address 0x4 - core index']
  #allocation1 [shape = 'u32[144,128]{1,0:T(1,128)}', space=vmem, size = 0x12000, scoped, tag = 'internal scratch']
  %s0 = inlined_call_operand.hbm [shape: f32[3], index: 0, kind: input, shape index: {}]
  %s1 = inlined_call_operand.hbm [shape: f32[2,8,512], index: 1, kind: input, shape index: {}]
  %s2 = inlined_call_operand.hbm [shape: f32[8,512], index: 2, kind: output, shape index: {}]
  %s3 = sld [smem:[#allocation0]]
  $region26: #{tpu_custom_call.1} parent=0
    _
  %s5 = ssub.s32 1, %s3
  %s6 = scalar_select 0, %s5, %s3
  $region1: #{tpu_custom_call.1} parent=0
    #allocation2 [shape = 'u8[512]{0}', space=smem, size = 0x200, scoped, tag = 'input window, operand 0, single buffered']
    #allocation3 [shape = 's32[1]{0}', space=sflag, size = 0x4, scoped, tag = 'scoped memory for tpu_custom_call.1']
    #allocation4 [shape = 's32[1]{0}', space=sflag, size = 0x4, scoped, tag = 'scoped memory for tpu_custom_call.1']
    #allocation5 [shape = 's32[1]{0}', space=sflag, size = 0x4, scoped, tag = 'scoped memory for tpu_custom_call.1']
    #allocation6 [shape = 'u8[32768]{0}', space=vmem, size = 0x8000, scoped, tag = 'input window, operand 1, single buffered']
    #allocation7 [shape = 'u8[16384]{0}', space=vmem, size = 0x4000, scoped, tag = 'output window, operand 0, single buffered']
    %7 = vsyncpa [#allocation5], 0
    %8 = vsyncpa [#allocation3], 0
    %9 = vsyncpa [#allocation4], 0
    // Predicated region
    $region2: #{tpu_custom_call.1} parent=1 // pred_check
      _
    $region3: #{tpu_custom_call.1} parent=1 // pred_check_branch
      %11 = sbr.rel (0) target = $region5
    $region4: #{tpu_custom_call.1} parent=1 // pred_region
      %s13 = ssub.s32 16, 16
      %14 = vsyncadd [#allocation5], %s13
      %17 = dma.hbm_to_smem %s0, 16, [#allocation2], [#allocation5]
    $region5: #{tpu_custom_call.1} parent=1 // pred_fallthru
      _
    // Predicated region
    $region6: #{tpu_custom_call.1} parent=1 // pred_check
      _
    $region7: #{tpu_custom_call.1} parent=1 // pred_check_branch
      %19 = sbr.rel (0) target = $region9
    $region8: #{tpu_custom_call.1} parent=1 // pred_region
      %s21 = ssub.s32 1024, 1024
      %22 = vsyncadd [#allocation3], %s21
      %s23 = sshll.u32 [#allocation6], 4
      %s24 = int_to_ptr.vmem [resolvable:$true] %s23
      %29 = dma.hbm_to_vmem [thread:$0]  %s1, 1024, %s24, [#allocation3], 512, 512, 32
    $region9: #{tpu_custom_call.1} parent=1 // pred_fallthru
      _
    // Predicated region
    $region10: #{tpu_custom_call.1} parent=1 // pred_check
      _
    $region11: #{tpu_custom_call.1} parent=1 // pred_check_branch
      %31 = sbr.rel (0) target = $region13
    $region12: #{tpu_custom_call.1} parent=1 // pred_region
      %32 = dma.done [#allocation5], 16
    $region13: #{tpu_custom_call.1} parent=1 // pred_fallthru
      _
    // Predicated region
    $region14: #{tpu_custom_call.1} parent=1 // pred_check
      _
    $region15: #{tpu_custom_call.1} parent=1 // pred_check_branch
      %34 = sbr.rel (0) target = $region17
    $region16: #{tpu_custom_call.1} parent=1 // pred_region
      %35 = dma.done [#allocation3], 1024
    $region17: #{tpu_custom_call.1} parent=1 // pred_fallthru
      _
    %36 = sfence
    %s37 = sld [smem:[#allocation2]]
    %s38 = sld [smem:[#allocation2 + $0x1]]
    %s39 = sld [smem:[#allocation2 + $0x2]]
    %v40 = vld [vmem:[#allocation6] sm:$0xff]
    %v41 = vld [vmem:[#allocation6 + $0x8] sm:$0xff]
    %v42 = vld [vmem:[#allocation6 + $0x10] sm:$0xff]
    %v43 = vld [vmem:[#allocation6 + $0x18] sm:$0xff]
    %v44 = vstv %s37
    %v45 = vmul.f32 %v40, %v44
    %v46 = vmul.f32 %v41, %v44
    %v47 = vmul.f32 %v42, %v44
    %v48 = vmul.f32 %v43, %v44
    %s49 = scalar_lea.vmem [#allocation6], 32
    %v50 = vld [vmem:[%s49] sm:$0xff]
    %v51 = vld [vmem:[%s49 + $0x8] sm:$0xff]
    %v52 = vld [vmem:[%s49 + $0x10] sm:$0xff]
    %v53 = vld [vmem:[%s49 + $0x18] sm:$0xff]
    %v54 = vstv %s38
    %v55 = vmul.f32 %v50, %v54
    %v56 = vmul.f32 %v51, %v54
    %v57 = vmul.f32 %v52, %v54
    %v58 = vmul.f32 %v53, %v54
    %v59 = vadd.f32 %v45, %v55
    %v60 = vadd.f32 %v46, %v56
    %v61 = vadd.f32 %v47, %v57
    %v62 = vadd.f32 %v48, %v58
    %v63 = vstv %s39
    %v64 = vadd.f32 %v59, %v63
    %v65 = vadd.f32 %v60, %v63
    %v66 = vadd.f32 %v61, %v63
    %v67 = vadd.f32 %v62, %v63
    %v68 = vmul.f32 %v64, 0.5
    %v69 = vmul.f32 %v65, 0.5
    %v70 = vmul.f32 %v66, 0.5
    %v71 = vmul.f32 %v67, 0.5
    %v72 = vtanh.pop %v68
    %v73 = vtanh.pop %v69
    %v74 = vtanh.pop %v70
    %v75 = vtanh.pop %v71
    %v76 = vmul.f32 %v72, 0.5
    %v77 = vmul.f32 %v73, 0.5
    %v78 = vmul.f32 %v74, 0.5
    %v79 = vmul.f32 %v75, 0.5
    %v80 = vadd.f32 %v76, 0.5
    %v81 = vadd.f32 %v77, 0.5
    %v82 = vadd.f32 %v78, 0.5
    %v83 = vadd.f32 %v79, 0.5
    %84 = vst [vmem:[#allocation7] sm:$0xff] %v80
    %85 = vst [vmem:[#allocation7 + $0x8] sm:$0xff] %v81
    %86 = vst [vmem:[#allocation7 + $0x10] sm:$0xff] %v82
    %87 = vst [vmem:[#allocation7 + $0x18] sm:$0xff] %v83
    // Predicated region
    $region18: #{tpu_custom_call.1} parent=1 // pred_check
      _
    $region19: #{tpu_custom_call.1} parent=1 // pred_check_branch
      %89 = sbr.rel (0) target = $region21
    $region20: #{tpu_custom_call.1} parent=1 // pred_region
      %s91 = ssub.s32 512, 512
      %92 = vsyncadd [#allocation4], %s91
      %s94 = sshll.u32 [#allocation7], 4
      %s95 = int_to_ptr.vmem [resolvable:$true] %s94
      %97 = dma.vmem_to_hbm [thread:$0]  %s95, 512, %s2, [#allocation4]
    $region21: #{tpu_custom_call.1} parent=1 // pred_fallthru
      _
    // Predicated region
    $region22: #{tpu_custom_call.1} parent=1 // pred_check
      _
    $region23: #{tpu_custom_call.1} parent=1 // pred_check_branch
      %99 = sbr.rel (0) target = $region25
    $region24: #{tpu_custom_call.1} parent=1 // pred_region
      %100 = dma.done [#allocation4], 512
    $region25: #{tpu_custom_call.1} parent=1 // pred_fallthru
      _
    %101 = vsyncpa [#allocation3], 1
    %102 = vsyncpa [#allocation4], 1
    %103 = vsyncpa [#allocation5], 1

</llo_original>
